<compile_context>
chip_gen: v5e
topology: v5e:2x2
jax: 0.10.0
libtpu: 0.0.40
codegen_flags: <defaults>
</compile_context>

<pallas_src>
import jax
import jax.numpy as jnp
from jax.experimental import pallas as pl
from jax.experimental.pallas import tpu as pltpu


# ---------------------------------------------------------------------------
# Kernels
# ---------------------------------------------------------------------------
def _resize_mul_kernel(att_ref, rwt_ref, rh_ref, c_ref, o_ref):
    """Separable bilinear resize of a block of attention planes, fused with c-multiply.

    att_ref : (AB, Ha, Wa)  bf16  low-res attention planes (AB == RB, or 1 when shared)
    rwt_ref : (AB, Wa, W)   bf16  column-resize operator Rw^T (grid-resident, KiB..MiB)
    rh_ref  : (AB, H,  Ha)  bf16  row-resize operator Rh      (grid-resident, KiB..MiB)
    c_ref   : (RB, H,  W)   caller dtype
    o_ref   : (RB, H,  W)   caller dtype
    """
    # Step 1 -- resize along W (contract Wa): (AB,Ha,Wa) @ (AB,Wa,W) -> (AB,Ha,W).
    mid = jax.lax.dot_general(
        att_ref[...], rwt_ref[...],
        dimension_numbers=(((2,), (1,)), ((0,), (0,))),
        preferred_element_type=jnp.float32)
    # Step 2 -- resize along H (contract Ha): (AB,H,Ha) @ (AB,Ha,W) -> (AB,H,W).
    up = jax.lax.dot_general(
        rh_ref[...], mid.astype(rh_ref.dtype),
        dimension_numbers=(((2,), (1,)), ((0,), (0,))),
        preferred_element_type=jnp.float32)
    # Fused elementwise multiply (broadcasts over the plane dim when AB == 1).
    o_ref[...] = (c_ref[...].astype(jnp.float32) * up).astype(o_ref.dtype)


def _mul_kernel(att_ref, c_ref, o_ref):
    """Same-spatial-size path: elementwise multiply (broadcast-aware)."""
    o_ref[...] = (c_ref[...] * att_ref[...]).astype(o_ref.dtype)


# ---------------------------------------------------------------------------
# PyTorch-compatible bilinear (align_corners=False) interpolation weights
# ---------------------------------------------------------------------------
def _source_index_weights(out_size, in_size):
    """PyTorch F.interpolate(mode='bilinear', align_corners=False) source taps."""
    scale = in_size / out_size
    dst = jnp.arange(out_size, dtype=jnp.float32)
    src = jnp.maximum((dst + 0.5) * scale - 0.5, 0.0)   # PyTorch clamps negatives to 0
    lo = jnp.clip(jnp.floor(src).astype(jnp.int32), 0, in_size - 1)
    hi = jnp.minimum(lo + 1, in_size - 1)
    w_hi = jnp.clip(src - lo.astype(jnp.float32), 0.0, 1.0)
    return lo, hi, w_hi


def _bilinear_matrix(out_size, in_size):
    """R of shape (out, in) such that R @ x resizes along an axis like PyTorch."""
    lo, hi, w_hi = _source_index_weights(out_size, in_size)
    rows = jnp.arange(out_size)
    m = jnp.zeros((out_size, in_size), jnp.float32)
    m = m.at[rows, lo].add(1.0 - w_hi)
    m = m.at[rows, hi].add(w_hi)
    return m


def _compiler_params(step_bytes, n_grid_axes):
    # Explicit scoped-VMEM budget (v5e default limit is 16 MiB; v7x physical is 64 MiB).
    limit = int(min(60 << 20, max(32 << 20, 3 * step_bytes)))
    return pltpu.CompilerParams(
        dimension_semantics=("parallel",) * n_grid_axes,
        vmem_limit_bytes=limit)


# ---------------------------------------------------------------------------
# Wrapper
# ---------------------------------------------------------------------------
def multi_forward(c, att):
    """Pallas implementation of multi.forward: c * bilinear_resize(att)."""
    c = jnp.asarray(c)        # keep the caller's dtype (no forced f32 upcast)
    att = jnp.asarray(att)
    N, C, H, W = c.shape
    Na, Ca, Ha, Wa = att.shape
    assert Na == N, "batch dims must match"
    shared = (Ca == 1 and C > 1)      # single attention map broadcast over channels
    if not shared:
        assert Ca == C, "channel dims must match (or att must have one channel)"

    P = N * C
    HW = H * W
    itemsize = c.dtype.itemsize
    out_dtype = c.dtype

    # ------------- same-spatial-size path: pure elementwise multiply ----------------
    if (Ha, Wa) == (H, W):
        if shared:
            # (N, C, HW) lane-dense blocks; the single attention plane per image is
            # broadcast in-kernel (never materialized to (N, C, H, W) in HBM).
            c3 = c.reshape(N, C, HW)
            a3 = att.reshape(N, 1, HW)
            if C * HW * itemsize <= (4 << 20):
                cb = C
            else:
                cb = max(8, ((4 << 20) // (HW * itemsize)) // 8 * 8)
            grid = (N, pl.cdiv(C, cb))
            step_bytes = (2 * cb + 1) * HW * itemsize
            out3 = pl.pallas_call(
                _mul_kernel,
                out_shape=jax.ShapeDtypeStruct((N, C, HW), out_dtype),
                grid=grid,
                in_specs=[pl.BlockSpec((1, 1, HW), lambda n, j: (n, 0, 0)),
                          pl.BlockSpec((1, cb, HW), lambda n, j: (n, j, 0))],
                out_specs=pl.BlockSpec((1, cb, HW), lambda n, j: (n, j, 0)),
                compiler_params=_compiler_params(step_bytes, 2),
            )(a3, c3)
            return out3.reshape(N, C, H, W)

        # Lane-dense (P, HW) layout, large plane blocks (>= 1-2 MiB per operand/step).
        c2 = c.reshape(P, HW)
        a2 = att.reshape(P, HW)
        rb = max(8, min(1024, P, (2 << 20) // max(1, HW * itemsize)))
        rb = P if rb >= P else rb - rb % 8
        grid = (pl.cdiv(P, rb),)
        step_bytes = 3 * rb * HW * itemsize
        out2 = pl.pallas_call(
            _mul_kernel,
            out_shape=jax.ShapeDtypeStruct((P, HW), out_dtype),
            grid=grid,
            in_specs=[pl.BlockSpec((rb, HW), lambda i: (i, 0)),
                      pl.BlockSpec((rb, HW), lambda i: (i, 0))],
            out_specs=pl.BlockSpec((rb, HW), lambda i: (i, 0)),
            compiler_params=_compiler_params(step_bytes, 1),
        )(a2, c2)
        return out2.reshape(N, C, H, W)

    # ------------- resize path: separable bilinear resize + fused multiply ----------
    # Tiny separable operators (KiB) instead of a dense Kronecker (Ha*Wa x H*W) one.
    # bf16 operands -> single-pass MXU; accumulation stays f32.
    rh = _bilinear_matrix(H, Ha).astype(jnp.bfloat16)         # (H, Ha)
    rwt = _bilinear_matrix(W, Wa).T.astype(jnp.bfloat16)      # (Wa, W)
    att3 = att.reshape(N * Ca, Ha, Wa).astype(jnp.bfloat16)   # (P or N, Ha, Wa)
    c3 = c.reshape(P, H, W)

    # Planes per grid step: sized for a few MiB of c/out per step; forced to divide C
    # when att is shared so a plane block never straddles two batch images.
    plane_bytes = 2 * H * W * itemsize + Ha * Wa * 2
    rb = max(1, min(128, P, (4 << 20) // max(1, plane_bytes)))
    if shared:
        rb = min(rb, C)
        while C % rb:
            rb -= 1
        ab = 1
        bpb = C // rb                              # plane blocks per batch image
        att_spec = pl.BlockSpec((1, Ha, Wa), lambda i: (i // bpb, 0, 0))
    else:
        if 8 <= rb < P:
            rb -= rb % 8
        ab = rb
        att_spec = pl.BlockSpec((rb, Ha, Wa), lambda i: (i, 0, 0))

    # Pre-tiled (one copy per plane in a block) operators so both resizes are plain
    # batched matmuls in-kernel (no in-kernel broadcast or reshape).  Constant
    # index_map => fetched once and resident across the grid.
    rwt_b = jnp.broadcast_to(rwt[None], (ab, Wa, W))
    rh_b = jnp.broadcast_to(rh[None], (ab, H, Ha))

    grid = (pl.cdiv(P, rb),)
    step_bytes = (ab * Ha * Wa * 2 + ab * (Wa * W + H * Ha) * 2
                  + 2 * rb * H * W * itemsize
                  + 2 * rb * H * W * 4)            # f32 temporaries (mid / up)
    out3 = pl.pallas_call(
        _resize_mul_kernel,
        out_shape=jax.ShapeDtypeStruct((P, H, W), out_dtype),
        grid=grid,
        in_specs=[att_spec,
                  pl.BlockSpec((ab, Wa, W), lambda i: (0, 0, 0)),
                  pl.BlockSpec((ab, H, Ha), lambda i: (0, 0, 0)),
                  pl.BlockSpec((rb, H, W), lambda i: (i, 0, 0))],
        out_specs=pl.BlockSpec((rb, H, W), lambda i: (i, 0, 0)),
        compiler_params=_compiler_params(step_bytes, 1),
    )(att3, rwt_b, rh_b, c3)
    return out3.reshape(N, C, H, W)


# ---------------------------------------------------------------------------
# Pure-JAX reference (mirrors PyTorch's gather + lerp bilinear formula, exact f32)
# ---------------------------------------------------------------------------
def multi_reference(c, att):
    N, C, H, W = c.shape
    _, Ca, Ha, Wa = att.shape
    if Ca == 1 and C > 1:
        att = jnp.broadcast_to(att, (N, C, Ha, Wa))
    if (Ha, Wa) != (H, W):
        ylo, yhi, wy = _source_index_weights(H, Ha)
        xlo, xhi, wx = _source_index_weights(W, Wa)
        top, bot = att[:, :, ylo, :], att[:, :, yhi, :]
        wy = wy[None, None, :, None]
        rows = top * (1.0 - wy) + bot * wy
        left, right = rows[:, :, :, xlo], rows[:, :, :, xhi]
        wx = wx[None, None, None, :]
        att = left * (1.0 - wx) + right * wx
    return c * att


if __name__ == "__main__":
    key = jax.random.PRNGKey(0)
    k1, k2, k3, k4, k5 = jax.random.split(key, 5)

    N, C, H, W = 2, 4, 16, 16       # full-res feature map c
    Ha, Wa = 8, 8                   # lower-res attention map -> exercises the resize
    c = jax.random.normal(k1, (N, C, H, W), jnp.float32)

    # 1) Resize path, per-channel attention.
    att = jax.random.normal(k2, (N, C, Ha, Wa), jnp.float32)
    out = jax.block_until_ready(multi_forward(c, att))
    ref = multi_reference(c, att)
    assert out.shape == (N, C, H, W), out.shape
    # bf16 MXU operands (per the perf review) -> loosened tolerance; an indexing or
    # weighting bug would give O(1) errors, not O(1e-2).
    assert jnp.allclose(out, ref, rtol=5e-2, atol=5e-2), float(jnp.max(jnp.abs(out - ref)))

    # 2) Resize path, shared single-channel attention (no broadcast materialization).
    att1 = jax.random.normal(k3, (N, 1, Ha, Wa), jnp.float32)
    out1 = jax.block_until_ready(multi_forward(c, att1))
    ref1 = multi_reference(c, att1)
    assert jnp.allclose(out1, ref1, rtol=5e-2, atol=5e-2), float(jnp.max(jnp.abs(out1 - ref1)))

    # 3) Same-size path: exact elementwise multiply.
    att_same = jax.random.normal(k4, (N, C, H, W), jnp.float32)
    out_same = jax.block_until_ready(multi_forward(c, att_same))
    assert jnp.allclose(out_same, c * att_same, rtol=1e-6, atol=1e-6)

    # 4) Same-size path with shared single-channel attention (exact).
    att_same1 = jax.random.normal(k5, (N, 1, H, W), jnp.float32)
    out_same1 = jax.block_until_ready(multi_forward(c, att_same1))
    assert jnp.allclose(out_same1, c * att_same1, rtol=1e-6, atol=1e-6)

    print("KERNEL_OK")
</pallas_src>

<mosaic_0001>
module attributes {stable_mosaic.version = 11 : i64} {
  func.func @_resize_mul_kernel(%arg0: i32, %arg1: memref<8x8x8xbf16, #tpu.memory_space<vmem>>, %arg2: memref<8x8x16xbf16, #tpu.memory_space<vmem>>, %arg3: memref<8x16x8xbf16, #tpu.memory_space<vmem>>, %arg4: memref<8x16x16xf32, #tpu.memory_space<vmem>>, %arg5: memref<8x16x16xf32, #tpu.memory_space<vmem>>) attributes {dimension_semantics = [#tpu.dimension_semantics<parallel>], iteration_bounds = array<i64: 1>, scalar_prefetch = 0 : i64, scratch_operands = 0 : i64, tpu.core_type = #tpu.core_type<tc>, window_params = [{transform_indices = @transform_0, window_bounds = array<i64: 8, 8, 8>}, {pipeline_mode = #tpu.pipeline_mode<synchronous>, transform_indices = @transform_1, window_bounds = array<i64: 8, 8, 16>}, {pipeline_mode = #tpu.pipeline_mode<synchronous>, transform_indices = @transform_2, window_bounds = array<i64: 8, 16, 8>}, {transform_indices = @transform_3, window_bounds = array<i64: 8, 16, 16>}, {transform_indices = @transform_4, window_bounds = array<i64: 8, 16, 16>}]} {
    %c0 = arith.constant 0 : index
    %c0_0 = arith.constant 0 : index
    %c0_1 = arith.constant 0 : index
    %0 = vector.load %arg1[%c0, %c0_0, %c0_1] : memref<8x8x8xbf16, #tpu.memory_space<vmem>>, vector<8x8x8xbf16>
    %c0_2 = arith.constant 0 : index
    %c0_3 = arith.constant 0 : index
    %c0_4 = arith.constant 0 : index
    %1 = vector.load %arg2[%c0_2, %c0_3, %c0_4] : memref<8x8x16xbf16, #tpu.memory_space<vmem>>, vector<8x8x16xbf16>
    %cst = arith.constant dense<0.000000e+00> : vector<8x8x16xf32>
    %2 = tpu.matmul %0, %1, %cst {dimension_numbers = #tpu.dot_dimension_numbers<[2], [1], [1], [2], [0, 0, 0, 1, 1, 2], [0], [0]>} : vector<8x8x8xbf16>, vector<8x8x16xbf16>, vector<8x8x16xf32> -> vector<8x8x16xf32>
    %c0_5 = arith.constant 0 : index
    %c0_6 = arith.constant 0 : index
    %c0_7 = arith.constant 0 : index
    %3 = vector.load %arg3[%c0_5, %c0_6, %c0_7] : memref<8x16x8xbf16, #tpu.memory_space<vmem>>, vector<8x16x8xbf16>
    %4 = arith.truncf %2 : vector<8x8x16xf32> to vector<8x8x16xbf16>
    %cst_8 = arith.constant dense<0.000000e+00> : vector<8x16x16xf32>
    %5 = tpu.matmul %3, %4, %cst_8 {dimension_numbers = #tpu.dot_dimension_numbers<[2], [1], [1], [2], [0, 0, 0, 1, 1, 2], [0], [0]>} : vector<8x16x8xbf16>, vector<8x8x16xbf16>, vector<8x16x16xf32> -> vector<8x16x16xf32>
    %c0_9 = arith.constant 0 : index
    %c0_10 = arith.constant 0 : index
    %c0_11 = arith.constant 0 : index
    %6 = vector.load %arg4[%c0_9, %c0_10, %c0_11] : memref<8x16x16xf32, #tpu.memory_space<vmem>>, vector<8x16x16xf32>
    %7 = arith.mulf %6, %5 : vector<8x16x16xf32>
    %c0_12 = arith.constant 0 : index
    %c0_13 = arith.constant 0 : index
    %c0_14 = arith.constant 0 : index
    %8 = vector.load %arg5[%c0_12, %c0_13, %c0_14] : memref<8x16x16xf32, #tpu.memory_space<vmem>>, vector<8x16x16xf32>
    tpu.vector_store %arg5[%c0_12, %c0_13, %c0_14], %7 {strides = array<i32>} : memref<8x16x16xf32, #tpu.memory_space<vmem>>, vector<8x16x16xf32>,
    return
  }
  func.func @transform_0(%arg0: i32) -> (i32, i32, i32) {
    %c0_i32 = arith.constant 0 : i32
    %c0_i32_0 = arith.constant 0 : i32
    %c0_i32_1 = arith.constant 0 : i32
    return %arg0, %c0_i32, %c0_i32_0 : i32, i32, i32
  }
  func.func @transform_1(%arg0: i32) -> (i32, i32, i32) {
    %c0_i32 = arith.constant 0 : i32
    %c0_i32_0 = arith.constant 0 : i32
    %c0_i32_1 = arith.constant 0 : i32
    %c0_i32_2 = arith.constant 0 : i32
    return %c0_i32, %c0_i32_0, %c0_i32_1 : i32, i32, i32
  }
  func.func @transform_2(%arg0: i32) -> (i32, i32, i32) {
    %c0_i32 = arith.constant 0 : i32
    %c0_i32_0 = arith.constant 0 : i32
    %c0_i32_1 = arith.constant 0 : i32
    %c0_i32_2 = arith.constant 0 : i32
    return %c0_i32, %c0_i32_0, %c0_i32_1 : i32, i32, i32
  }
  func.func @transform_3(%arg0: i32) -> (i32, i32, i32) {
    %c0_i32 = arith.constant 0 : i32
    %c0_i32_0 = arith.constant 0 : i32
    %c0_i32_1 = arith.constant 0 : i32
    return %arg0, %c0_i32, %c0_i32_0 : i32, i32, i32
  }
  func.func @transform_4(%arg0: i32) -> (i32, i32, i32) {
    %c0_i32 = arith.constant 0 : i32
    %c0_i32_0 = arith.constant 0 : i32
    %c0_i32_1 = arith.constant 0 : i32
    return %arg0, %c0_i32, %c0_i32_0 : i32, i32, i32
  }
}

</mosaic_0001>

<llo_original>
// kernel: tpu_custom_call.1
$region0: #{tpu_custom_call.1}
  #allocation0 [shape = 'u32[]', space=smem, size = 0x4, offset = 0x4, fixed_abs, tag = 'smem constant byte address 0x4 - core index']
  #allocation1 [shape = 'u32[72,128]{1,0:T(1,128)}', space=vmem, size = 0x9000, scoped, tag = 'internal scratch']
  %s0 = inlined_call_operand.vmem [shape: bf16[8,8,8], index: 0, kind: input, shape index: {}]
  %s1 = inlined_call_operand.vmem [shape: bf16[8,8,16], index: 1, kind: input, shape index: {}]
  %s2 = inlined_call_operand.vmem [shape: bf16[8,16,8], index: 2, kind: input, shape index: {}]
  %s3 = inlined_call_operand.hbm [shape: f32[8,16,16], index: 3, kind: input, shape index: {}]
  %s4 = inlined_call_operand.hbm [shape: f32[8,16,16], index: 4, kind: output, shape index: {}]
  %s5 = sld [smem:[#allocation0]]
  $region30: #{tpu_custom_call.1} parent=0
    _
  %s7 = ssub.s32 1, %s5
  %s8 = scalar_select 0, %s7, %s5
  $region1: #{tpu_custom_call.1} parent=0
    #allocation2 [shape = 'u8[65536]{0}', space=vmem, size = 0x10000, scoped, tag = 'input window, operand 3, single buffered']
    #allocation3 [shape = 's32[1]{0}', space=sflag, size = 0x4, scoped, tag = 'scoped memory for tpu_custom_call.1']
    #allocation4 [shape = 's32[1]{0}', space=sflag, size = 0x4, scoped, tag = 'scoped memory for tpu_custom_call.1']
    #allocation5 [shape = 'u8[65536]{0}', space=vmem, size = 0x10000, scoped, tag = 'output window, operand 0, single buffered']
    %9 = vsyncpa [#allocation3], 0
    %10 = vsyncpa [#allocation4], 0
    // Predicated region
    $region2: #{tpu_custom_call.1} parent=1 // pred_check
      _
    $region3: #{tpu_custom_call.1} parent=1 // pred_check_branch
      %12 = sbr.rel (0) target = $region5
    $region4: #{tpu_custom_call.1} parent=1 // pred_region
      _
    $region5: #{tpu_custom_call.1} parent=1 // pred_fallthru
      _
    // Predicated region
    $region6: #{tpu_custom_call.1} parent=1 // pred_check
      _
    $region7: #{tpu_custom_call.1} parent=1 // pred_check_branch
      %14 = sbr.rel (0) target = $region9
    $region8: #{tpu_custom_call.1} parent=1 // pred_region
      _
    $region9: #{tpu_custom_call.1} parent=1 // pred_fallthru
      _
    // Predicated region
    $region10: #{tpu_custom_call.1} parent=1 // pred_check
      _
    $region11: #{tpu_custom_call.1} parent=1 // pred_check_branch
      %16 = sbr.rel (0) target = $region13
    $region12: #{tpu_custom_call.1} parent=1 // pred_region
      _
    $region13: #{tpu_custom_call.1} parent=1 // pred_fallthru
      _
    // Predicated region
    $region14: #{tpu_custom_call.1} parent=1 // pred_check
      _
    $region15: #{tpu_custom_call.1} parent=1 // pred_check_branch
      %18 = sbr.rel (0) target = $region17
    $region16: #{tpu_custom_call.1} parent=1 // pred_region
      %20 = vsyncadd [#allocation3], 0
      %s21 = sshll.u32 %s3, 4
      %s22 = int_to_ptr.hbm [resolvable:$true] %s21
      %s23 = sshll.u32 [#allocation2], 4
      %s24 = int_to_ptr.vmem [resolvable:$true] %s23
      %29 = dma.hbm_to_vmem [thread:$0]  %s22, 2048, %s24, [#allocation3], 128, 128, 8
    $region17: #{tpu_custom_call.1} parent=1 // pred_fallthru
      _
    // Predicated region
    $region18: #{tpu_custom_call.1} parent=1 // pred_check
      _
    $region19: #{tpu_custom_call.1} parent=1 // pred_check_branch
      %31 = sbr.rel (0) target = $region21
    $region20: #{tpu_custom_call.1} parent=1 // pred_region
      %33 = dma.done [#allocation3], 2048
    $region21: #{tpu_custom_call.1} parent=1 // pred_fallthru
      _
    %v35 = vld [vmem:[%s0] sm:$0xf]
    %v36 = vld [vmem:[%s0 + $0x4] sm:$0xf]
    %v37 = vld [vmem:[%s0 + $0x8] sm:$0xf]
    %v38 = vld [vmem:[%s0 + $0xc] sm:$0xf]
    %v39 = vld [vmem:[%s0 + $0x10] sm:$0xf]
    %v40 = vld [vmem:[%s0 + $0x14] sm:$0xf]
    %v41 = vld [vmem:[%s0 + $0x18] sm:$0xf]
    %v42 = vld [vmem:[%s0 + $0x1c] sm:$0xf]
    %v43 = vld [vmem:[%s1] sm:$0xf]
    %v44 = vld [vmem:[%s1 + $0x4] sm:$0xf]
    %v45 = vld [vmem:[%s1 + $0x8] sm:$0xf]
    %v46 = vld [vmem:[%s1 + $0xc] sm:$0xf]
    %v47 = vld [vmem:[%s1 + $0x10] sm:$0xf]
    %v48 = vld [vmem:[%s1 + $0x14] sm:$0xf]
    %v49 = vld [vmem:[%s1 + $0x18] sm:$0xf]
    %v50 = vld [vmem:[%s1 + $0x1c] sm:$0xf]
    %vm51 = vcmask 64512
    %v53 = vsel %vm51, %v35, 0
    %vm55 = vcmask 1043456
    %v57 = vsel %vm55, %v43, 0
    %59 = vmatpush.bf16.msra.mxu0 0
    %60 = vmatpush.bf16.msra.mxu0 0
    %61 = vmatpush.bf16.msra.mxu0 0
    %62 = vmatpush.bf16.msra.mxu0 0
    %63 = vmatpush.bf16.msra.mxu0 0
    %64 = vmatpush.bf16.msra.mxu0 0
    %65 = vmatpush.bf16.msra.mxu0 0
    %66 = vmatpush.bf16.msra.mxu0 %v57
    %67 = vmatmul.bf16.gmra.mxu0 %v53
    %v68 = vpop.f32.mrf.mxu0
    %v69 = vadd.f32 0.0, %v68
    %v70 = vpop.f32.mrf.mxu0
    %71 = vdwg.mxu0
    %v73 = vsel %vm51, %v36, 0
    %v76 = vsel %vm55, %v44, 0
    %78 = vmatpush.bf16.msra.mxu0 0
    %79 = vmatpush.bf16.msra.mxu0 0
    %80 = vmatpush.bf16.msra.mxu0 0
    %81 = vmatpush.bf16.msra.mxu0 0
    %82 = vmatpush.bf16.msra.mxu0 0
    %83 = vmatpush.bf16.msra.mxu0 0
    %84 = vmatpush.bf16.msra.mxu0 0
    %85 = vmatpush.bf16.msra.mxu0 %v76
    %86 = vmatmul.bf16.gmra.mxu0 %v73
    %v87 = vpop.f32.mrf.mxu0
    %v88 = vadd.f32 0.0, %v87
    %v89 = vpop.f32.mrf.mxu0
    %90 = vdwg.mxu0
    %v92 = vsel %vm51, %v37, 0
    %v95 = vsel %vm55, %v45, 0
    %97 = vmatpush.bf16.msra.mxu0 0
    %98 = vmatpush.bf16.msra.mxu0 0
    %99 = vmatpush.bf16.msra.mxu0 0
    %100 = vmatpush.bf16.msra.mxu0 0
    %101 = vmatpush.bf16.msra.mxu0 0
    %102 = vmatpush.bf16.msra.mxu0 0
    %103 = vmatpush.bf16.msra.mxu0 0
    %104 = vmatpush.bf16.msra.mxu0 %v95
    %105 = vmatmul.bf16.gmra.mxu0 %v92
    %v106 = vpop.f32.mrf.mxu0
    %v107 = vadd.f32 0.0, %v106
    %v108 = vpop.f32.mrf.mxu0
    %109 = vdwg.mxu0
    %v111 = vsel %vm51, %v38, 0
    %v114 = vsel %vm55, %v46, 0
    %116 = vmatpush.bf16.msra.mxu0 0
    %117 = vmatpush.bf16.msra.mxu0 0
    %118 = vmatpush.bf16.msra.mxu0 0
    %119 = vmatpush.bf16.msra.mxu0 0
    %120 = vmatpush.bf16.msra.mxu0 0
    %121 = vmatpush.bf16.msra.mxu0 0
    %122 = vmatpush.bf16.msra.mxu0 0
    %123 = vmatpush.bf16.msra.mxu0 %v114
    %124 = vmatmul.bf16.gmra.mxu0 %v111
    %v125 = vpop.f32.mrf.mxu0
    %v126 = vadd.f32 0.0, %v125
    %v127 = vpop.f32.mrf.mxu0
    %128 = vdwg.mxu0
    %v130 = vsel %vm51, %v39, 0
    %v133 = vsel %vm55, %v47, 0
    %135 = vmatpush.bf16.msra.mxu0 0
    %136 = vmatpush.bf16.msra.mxu0 0
    %137 = vmatpush.bf16.msra.mxu0 0
    %138 = vmatpush.bf16.msra.mxu0 0
    %139 = vmatpush.bf16.msra.mxu0 0
    %140 = vmatpush.bf16.msra.mxu0 0
    %141 = vmatpush.bf16.msra.mxu0 0
    %142 = vmatpush.bf16.msra.mxu0 %v133
    %143 = vmatmul.bf16.gmra.mxu0 %v130
    %v144 = vpop.f32.mrf.mxu0
    %v145 = vadd.f32 0.0, %v144
    %v146 = vpop.f32.mrf.mxu0
    %147 = vdwg.mxu0
    %v149 = vsel %vm51, %v40, 0
    %v152 = vsel %vm55, %v48, 0
    %154 = vmatpush.bf16.msra.mxu0 0
    %155 = vmatpush.bf16.msra.mxu0 0
    %156 = vmatpush.bf16.msra.mxu0 0
    %157 = vmatpush.bf16.msra.mxu0 0
    %158 = vmatpush.bf16.msra.mxu0 0
    %159 = vmatpush.bf16.msra.mxu0 0
    %160 = vmatpush.bf16.msra.mxu0 0
    %161 = vmatpush.bf16.msra.mxu0 %v152
    %162 = vmatmul.bf16.gmra.mxu0 %v149
    %v163 = vpop.f32.mrf.mxu0
    %v164 = vadd.f32 0.0, %v163
    %v165 = vpop.f32.mrf.mxu0
    %166 = vdwg.mxu0
    %v168 = vsel %vm51, %v41, 0
    %v171 = vsel %vm55, %v49, 0
    %173 = vmatpush.bf16.msra.mxu0 0
    %174 = vmatpush.bf16.msra.mxu0 0
    %175 = vmatpush.bf16.msra.mxu0 0
    %176 = vmatpush.bf16.msra.mxu0 0
    %177 = vmatpush.bf16.msra.mxu0 0
    %178 = vmatpush.bf16.msra.mxu0 0
    %179 = vmatpush.bf16.msra.mxu0 0
    %180 = vmatpush.bf16.msra.mxu0 %v171
    %181 = vmatmul.bf16.gmra.mxu0 %v168
    %v182 = vpop.f32.mrf.mxu0
    %v183 = vadd.f32 0.0, %v182
    %v184 = vpop.f32.mrf.mxu0
    %185 = vdwg.mxu0
    %v187 = vsel %vm51, %v42, 0
    %v190 = vsel %vm55, %v50, 0
    %192 = vmatpush.bf16.msra.mxu0 0
    %193 = vmatpush.bf16.msra.mxu0 0
    %194 = vmatpush.bf16.msra.mxu0 0
    %195 = vmatpush.bf16.msra.mxu0 0
    %196 = vmatpush.bf16.msra.mxu0 0
    %197 = vmatpush.bf16.msra.mxu0 0
    %198 = vmatpush.bf16.msra.mxu0 0
    %199 = vmatpush.bf16.msra.mxu0 %v190
    %200 = vmatmul.bf16.gmra.mxu0 %v187
    %v201 = vpop.f32.mrf.mxu0
    %v202 = vadd.f32 0.0, %v201
    %v203 = vpop.f32.mrf.mxu0
    %204 = vdwg.mxu0
    %v205 = vld [vmem:[%s2] sm:$0xf]
    %v206 = vld [vmem:[%s2 + $0x4] sm:$0xf]
    %v207 = vld [vmem:[%s2 + $0x8] sm:$0xf]
    %v208 = vld [vmem:[%s2 + $0xc] sm:$0xf]
    %v209 = vld [vmem:[%s2 + $0x10] sm:$0xf]
    %v210 = vld [vmem:[%s2 + $0x14] sm:$0xf]
    %v211 = vld [vmem:[%s2 + $0x18] sm:$0xf]
    %v212 = vld [vmem:[%s2 + $0x1c] sm:$0xf]
    %v213 = vld [vmem:[%s2 + $0x20] sm:$0xf]
    %v214 = vld [vmem:[%s2 + $0x24] sm:$0xf]
    %v215 = vld [vmem:[%s2 + $0x28] sm:$0xf]
    %v216 = vld [vmem:[%s2 + $0x2c] sm:$0xf]
    %v217 = vld [vmem:[%s2 + $0x30] sm:$0xf]
    %v218 = vld [vmem:[%s2 + $0x34] sm:$0xf]
    %v219 = vld [vmem:[%s2 + $0x38] sm:$0xf]
    %v220 = vld [vmem:[%s2 + $0x3c] sm:$0xf]
    %v221 = vpack.c.bf16 %v69, %v69
    %v222 = vpack.c.bf16 %v88, %v88
    %v223 = vpack.c.bf16 %v107, %v107
    %v224 = vpack.c.bf16 %v126, %v126
    %v225 = vpack.c.bf16 %v145, %v145
    %v226 = vpack.c.bf16 %v164, %v164
    %v227 = vpack.c.bf16 %v183, %v183
    %v228 = vpack.c.bf16 %v202, %v202
    %v231 = vunpack.c.l.b16 %v205
    %v232 = vunpack.c.l.b16 %v206
    %v233 = vpack.c.b16 %v232, %v231
    %v235 = vsel %vm51, %v233, 0
    %v238 = vsel %vm55, %v221, 0
    %240 = vmatpush.bf16.msra.mxu0 0
    %241 = vmatpush.bf16.msra.mxu0 0
    %242 = vmatpush.bf16.msra.mxu0 0
    %243 = vmatpush.bf16.msra.mxu0 0
    %244 = vmatpush.bf16.msra.mxu0 0
    %245 = vmatpush.bf16.msra.mxu0 0
    %246 = vmatpush.bf16.msra.mxu0 0
    %247 = vmatpush.bf16.msra.mxu0 %v238
    %248 = vmatmul.bf16.gmra.mxu0 %v235
    %v249 = vpop.f32.mrf.mxu0
    %v250 = vadd.f32 0.0, %v249
    %v251 = vpop.f32.mrf.mxu0
    %v252 = vadd.f32 0.0, %v251
    %253 = vdwg.mxu0
    %v256 = vunpack.c.l.b16 %v207
    %v257 = vunpack.c.l.b16 %v208
    %v258 = vpack.c.b16 %v257, %v256
    %v260 = vsel %vm51, %v258, 0
    %v263 = vsel %vm55, %v222, 0
    %265 = vmatpush.bf16.msra.mxu0 0
    %266 = vmatpush.bf16.msra.mxu0 0
    %267 = vmatpush.bf16.msra.mxu0 0
    %268 = vmatpush.bf16.msra.mxu0 0
    %269 = vmatpush.bf16.msra.mxu0 0
    %270 = vmatpush.bf16.msra.mxu0 0
    %271 = vmatpush.bf16.msra.mxu0 0
    %272 = vmatpush.bf16.msra.mxu0 %v263
    %273 = vmatmul.bf16.gmra.mxu0 %v260
    %v274 = vpop.f32.mrf.mxu0
    %v275 = vadd.f32 0.0, %v274
    %v276 = vpop.f32.mrf.mxu0
    %v277 = vadd.f32 0.0, %v276
    %278 = vdwg.mxu0
    %v281 = vunpack.c.l.b16 %v209
    %v282 = vunpack.c.l.b16 %v210
    %v283 = vpack.c.b16 %v282, %v281
    %v285 = vsel %vm51, %v283, 0
    %v288 = vsel %vm55, %v223, 0
    %290 = vmatpush.bf16.msra.mxu0 0
    %291 = vmatpush.bf16.msra.mxu0 0
    %292 = vmatpush.bf16.msra.mxu0 0
    %293 = vmatpush.bf16.msra.mxu0 0
    %294 = vmatpush.bf16.msra.mxu0 0
    %295 = vmatpush.bf16.msra.mxu0 0
    %296 = vmatpush.bf16.msra.mxu0 0
    %297 = vmatpush.bf16.msra.mxu0 %v288
    %298 = vmatmul.bf16.gmra.mxu0 %v285
    %v299 = vpop.f32.mrf.mxu0
    %v300 = vadd.f32 0.0, %v299
    %v301 = vpop.f32.mrf.mxu0
    %v302 = vadd.f32 0.0, %v301
    %303 = vdwg.mxu0
    %v306 = vunpack.c.l.b16 %v211
    %v307 = vunpack.c.l.b16 %v212
    %v308 = vpack.c.b16 %v307, %v306
    %v310 = vsel %vm51, %v308, 0
    %v313 = vsel %vm55, %v224, 0
    %315 = vmatpush.bf16.msra.mxu0 0
    %316 = vmatpush.bf16.msra.mxu0 0
    %317 = vmatpush.bf16.msra.mxu0 0
    %318 = vmatpush.bf16.msra.mxu0 0
    %319 = vmatpush.bf16.msra.mxu0 0
    %320 = vmatpush.bf16.msra.mxu0 0
    %321 = vmatpush.bf16.msra.mxu0 0
    %322 = vmatpush.bf16.msra.mxu0 %v313
    %323 = vmatmul.bf16.gmra.mxu0 %v310
    %v324 = vpop.f32.mrf.mxu0
    %v325 = vadd.f32 0.0, %v324
    %v326 = vpop.f32.mrf.mxu0
    %v327 = vadd.f32 0.0, %v326
    %328 = vdwg.mxu0
    %v331 = vunpack.c.l.b16 %v213
    %v332 = vunpack.c.l.b16 %v214
    %v333 = vpack.c.b16 %v332, %v331
    %v335 = vsel %vm51, %v333, 0
    %v338 = vsel %vm55, %v225, 0
    %340 = vmatpush.bf16.msra.mxu0 0
    %341 = vmatpush.bf16.msra.mxu0 0
    %342 = vmatpush.bf16.msra.mxu0 0
    %343 = vmatpush.bf16.msra.mxu0 0
    %344 = vmatpush.bf16.msra.mxu0 0
    %345 = vmatpush.bf16.msra.mxu0 0
    %346 = vmatpush.bf16.msra.mxu0 0
    %347 = vmatpush.bf16.msra.mxu0 %v338
    %348 = vmatmul.bf16.gmra.mxu0 %v335
    %v349 = vpop.f32.mrf.mxu0
    %v350 = vadd.f32 0.0, %v349
    %v351 = vpop.f32.mrf.mxu0
    %v352 = vadd.f32 0.0, %v351
    %353 = vdwg.mxu0
    %v356 = vunpack.c.l.b16 %v215
    %v357 = vunpack.c.l.b16 %v216
    %v358 = vpack.c.b16 %v357, %v356
    %v360 = vsel %vm51, %v358, 0
    %v363 = vsel %vm55, %v226, 0
    %365 = vmatpush.bf16.msra.mxu0 0
    %366 = vmatpush.bf16.msra.mxu0 0
    %367 = vmatpush.bf16.msra.mxu0 0
    %368 = vmatpush.bf16.msra.mxu0 0
    %369 = vmatpush.bf16.msra.mxu0 0
    %370 = vmatpush.bf16.msra.mxu0 0
    %371 = vmatpush.bf16.msra.mxu0 0
    %372 = vmatpush.bf16.msra.mxu0 %v363
    %373 = vmatmul.bf16.gmra.mxu0 %v360
    %v374 = vpop.f32.mrf.mxu0
    %v375 = vadd.f32 0.0, %v374
    %v376 = vpop.f32.mrf.mxu0
    %v377 = vadd.f32 0.0, %v376
    %378 = vdwg.mxu0
    %v381 = vunpack.c.l.b16 %v217
    %v382 = vunpack.c.l.b16 %v218
    %v383 = vpack.c.b16 %v382, %v381
    %v385 = vsel %vm51, %v383, 0
    %v388 = vsel %vm55, %v227, 0
    %390 = vmatpush.bf16.msra.mxu0 0
    %391 = vmatpush.bf16.msra.mxu0 0
    %392 = vmatpush.bf16.msra.mxu0 0
    %393 = vmatpush.bf16.msra.mxu0 0
    %394 = vmatpush.bf16.msra.mxu0 0
    %395 = vmatpush.bf16.msra.mxu0 0
    %396 = vmatpush.bf16.msra.mxu0 0
    %397 = vmatpush.bf16.msra.mxu0 %v388
    %398 = vmatmul.bf16.gmra.mxu0 %v385
    %v399 = vpop.f32.mrf.mxu0
    %v400 = vadd.f32 0.0, %v399
    %v401 = vpop.f32.mrf.mxu0
    %v402 = vadd.f32 0.0, %v401
    %403 = vdwg.mxu0
    %v406 = vunpack.c.l.b16 %v219
    %v407 = vunpack.c.l.b16 %v220
    %v408 = vpack.c.b16 %v407, %v406
    %v410 = vsel %vm51, %v408, 0
    %v413 = vsel %vm55, %v228, 0
    %415 = vmatpush.bf16.msra.mxu0 0
    %416 = vmatpush.bf16.msra.mxu0 0
    %417 = vmatpush.bf16.msra.mxu0 0
    %418 = vmatpush.bf16.msra.mxu0 0
    %419 = vmatpush.bf16.msra.mxu0 0
    %420 = vmatpush.bf16.msra.mxu0 0
    %421 = vmatpush.bf16.msra.mxu0 0
    %422 = vmatpush.bf16.msra.mxu0 %v413
    %423 = vmatmul.bf16.gmra.mxu0 %v410
    %v424 = vpop.f32.mrf.mxu0
    %v425 = vadd.f32 0.0, %v424
    %v426 = vpop.f32.mrf.mxu0
    %v427 = vadd.f32 0.0, %v426
    %428 = vdwg.mxu0
    %v429 = vld [vmem:[#allocation2] sm:$0xff]
    %v430 = vld [vmem:[#allocation2 + $0x8] sm:$0xff]
    %v431 = vld [vmem:[#allocation2 + $0x10] sm:$0xff]
    %v432 = vld [vmem:[#allocation2 + $0x18] sm:$0xff]
    %v433 = vld [vmem:[#allocation2 + $0x20] sm:$0xff]
    %v434 = vld [vmem:[#allocation2 + $0x28] sm:$0xff]
    %v435 = vld [vmem:[#allocation2 + $0x30] sm:$0xff]
    %v436 = vld [vmem:[#allocation2 + $0x38] sm:$0xff]
    %v437 = vld [vmem:[#allocation2 + $0x40] sm:$0xff]
    %v438 = vld [vmem:[#allocation2 + $0x48] sm:$0xff]
    %v439 = vld [vmem:[#allocation2 + $0x50] sm:$0xff]
    %v440 = vld [vmem:[#allocation2 + $0x58] sm:$0xff]
    %v441 = vld [vmem:[#allocation2 + $0x60] sm:$0xff]
    %v442 = vld [vmem:[#allocation2 + $0x68] sm:$0xff]
    %v443 = vld [vmem:[#allocation2 + $0x70] sm:$0xff]
    %v444 = vld [vmem:[#allocation2 + $0x78] sm:$0xff]
    %v445 = vmul.f32 %v429, %v250
    %v446 = vmul.f32 %v430, %v252
    %v447 = vmul.f32 %v431, %v275
    %v448 = vmul.f32 %v432, %v277
    %v449 = vmul.f32 %v433, %v300
    %v450 = vmul.f32 %v434, %v302
    %v451 = vmul.f32 %v435, %v325
    %v452 = vmul.f32 %v436, %v327
    %v453 = vmul.f32 %v437, %v350
    %v454 = vmul.f32 %v438, %v352
    %v455 = vmul.f32 %v439, %v375
    %v456 = vmul.f32 %v440, %v377
    %v457 = vmul.f32 %v441, %v400
    %v458 = vmul.f32 %v442, %v402
    %v459 = vmul.f32 %v443, %v425
    %v460 = vmul.f32 %v444, %v427
    %vm461 = vcmask 130048
    %462 = vst.msk [vmem:[#allocation5] sm:$0xff] %vm461, %v445
    %463 = vst.msk [vmem:[#allocation5 + $0x8] sm:$0xff] %vm461, %v446
    %464 = vst.msk [vmem:[#allocation5 + $0x10] sm:$0xff] %vm461, %v447
    %465 = vst.msk [vmem:[#allocation5 + $0x18] sm:$0xff] %vm461, %v448
    %466 = vst.msk [vmem:[#allocation5 + $0x20] sm:$0xff] %vm461, %v449
    %467 = vst.msk [vmem:[#allocation5 + $0x28] sm:$0xff] %vm461, %v450
    %468 = vst.msk [vmem:[#allocation5 + $0x30] sm:$0xff] %vm461, %v451
    %469 = vst.msk [vmem:[#allocation5 + $0x38] sm:$0xff] %vm461, %v452
    %470 = vst.msk [vmem:[#allocation5 + $0x40] sm:$0xff] %vm461, %v453
    %471 = vst.msk [vmem:[#allocation5 + $0x48] sm:$0xff] %vm461, %v454
    %472 = vst.msk [vmem:[#allocation5 + $0x50] sm:$0xff] %vm461, %v455
    %473 = vst.msk [vmem:[#allocation5 + $0x58] sm:$0xff] %vm461, %v456
    %474 = vst.msk [vmem:[#allocation5 + $0x60] sm:$0xff] %vm461, %v457
    %475 = vst.msk [vmem:[#allocation5 + $0x68] sm:$0xff] %vm461, %v458
    %476 = vst.msk [vmem:[#allocation5 + $0x70] sm:$0xff] %vm461, %v459
    %477 = vst.msk [vmem:[#allocation5 + $0x78] sm:$0xff] %vm461, %v460
    // Predicated region
    $region22: #{tpu_custom_call.1} parent=1 // pred_check
      _
    $region23: #{tpu_custom_call.1} parent=1 // pred_check_branch
      %479 = sbr.rel (0) target = $region25
    $region24: #{tpu_custom_call.1} parent=1 // pred_region
      %481 = vsyncadd [#allocation4], 0
      %s482 = sshll.u32 [#allocation5], 4
      %s483 = int_to_ptr.vmem [resolvable:$true] %s482
      %s484 = sshll.u32 %s4, 4
      %s485 = int_to_ptr.hbm [resolvable:$true] %s484
      %490 = dma.vmem_to_hbm [thread:$0]  %s483, 2048, %s485, [#allocation4], 128, 128, 8
    $region25: #{tpu_custom_call.1} parent=1 // pred_fallthru
      _
    // Predicated region
    $region26: #{tpu_custom_call.1} parent=1 // pred_check
      _
    $region27: #{tpu_custom_call.1} parent=1 // pred_check_branch
      %492 = sbr.rel (0) target = $region29
    $region28: #{tpu_custom_call.1} parent=1 // pred_region
      %494 = dma.done [#allocation4], 2048
    $region29: #{tpu_custom_call.1} parent=1 // pred_fallthru
      _
    %495 = vsyncpa [#allocation3], 1
    %496 = vsyncpa [#allocation4], 1

</llo_original>
